<compile_context>
chip_gen: v7x
topology: tpu7x:2x2x1
jax: 0.10.0
libtpu: 0.0.40
codegen_flags: <defaults>
</compile_context>

<pallas_src>
import functools

import jax
import jax.numpy as jnp
from jax.experimental import pallas as pl
from jax.experimental.pallas import tpu as pltpu


def _round_up(x, m):
    return ((x + m - 1) // m) * m


def make_mlp_kernel(n_chunks, chunk):
    """Kernel over one (tB, D) batch tile, processed in `chunk`-lane sub-chunks."""

    def mlp_kernel(x_ref, w1_ref, b1_ref, w2_ref, b2_ref, o_ref):
        # Weights / biases are VMEM-resident (constant index_maps); load once.
        w1 = w1_ref[...]          # (H, D)
        b1 = b1_ref[...]          # (H, 1)  — broadcasts over lanes
        w2 = w2_ref[...]          # (1, H)
        b2 = b2_ref[0, 0]         # scalar second bias from SMEM

        def body(c, carry):
            start = pl.multiple_of(c * chunk, chunk)
            xc = x_ref[pl.ds(start, chunk), :]             # (chunk, D)
            xcT = xc.T                                     # (D, chunk) — XLU, free slot
            # linear1: (H, D) @ (D, chunk) -> (H, chunk); bias + ReLU at full lane width.
            h = jnp.dot(w1, xcT, preferred_element_type=jnp.float32)
            h = jnp.maximum(h + b1, 0.0)
            # linear2: (1, H) @ (H, chunk) -> (1, chunk)
            z = jnp.dot(w2, h, preferred_element_type=jnp.float32)
            z = z + b2
            # sigmoid on the EUP (exp + approx reciprocal); ~1e-3 rel. error.
            s = pl.reciprocal(1.0 + jnp.exp(-z), approx=True)
            o_ref[:, pl.ds(start, chunk)] = s.astype(o_ref.dtype)
            return carry

        jax.lax.fori_loop(0, n_chunks, body, None, unroll=True)

    return mlp_kernel


@functools.partial(jax.jit, static_argnames=("tile_b", "chunk_b"))
def neural_net_forward(x, w1, b1, w2, b2, *, tile_b=4096, chunk_b=512):
    """x: (B, D) f32; w1: (H, D); b1: (H,); w2: (1, H); b2: (1,)  (PyTorch layout)."""
    B, D = x.shape
    H, D2 = w1.shape
    assert D2 == D
    assert b1.shape == (H,)
    assert w2.shape == (1, H)
    assert b2.shape == (1,)

    # Batch block: large enough to amortize per-step overhead, but with at
    # least 2 grid steps when B > 128 so v7x's two TensorCores both get work.
    tB = max(128, min(tile_b, _round_up(pl.cdiv(B, 2), 128)))
    if tB >= chunk_b:
        tB = _round_up(tB, chunk_b)   # tile is a whole number of sub-chunks
        chunk = chunk_b
    else:
        chunk = tB                    # small-batch case: single sub-chunk
    n_chunks = tB // chunk
    grid = (pl.cdiv(B, tB),)          # ragged last block handled by Pallas

    b1_col = b1.reshape(H, 1)         # broadcast over lanes in-kernel
    b2_s = b2.reshape(1, 1)           # scalar, lives in SMEM

    outT = pl.pallas_call(
        make_mlp_kernel(n_chunks, chunk),
        out_shape=jax.ShapeDtypeStruct((1, B), x.dtype),
        grid_spec=pltpu.PrefetchScalarGridSpec(
            num_scalar_prefetch=0,
            grid=grid,
            in_specs=[
                # x tile in native (B, D) layout: streamed / double-buffered.
                pl.BlockSpec((tB, D), lambda i: (i, 0)),
                # Weights & bias: constant index_map -> VMEM-resident, DMA'd once.
                pl.BlockSpec((H, D), lambda i: (0, 0)),
                pl.BlockSpec((H, 1), lambda i: (0, 0)),
                pl.BlockSpec((1, H), lambda i: (0, 0)),
                # Scalar second bias in SMEM (no VMEM DMA, no padded vreg).
                pl.BlockSpec(memory_space=pltpu.MemorySpace.SMEM),
            ],
            out_specs=pl.BlockSpec((1, tB), lambda i: (0, i)),
        ),
        compiler_params=pltpu.CompilerParams(
            # Batch tiles are independent -> shard across TensorCores on v7x.
            dimension_semantics=("parallel",),
            # Explicit, generous-but-small limit (v5e default scoped VMEM = 16 MiB).
            vmem_limit_bytes=32 * 1024 * 1024,
        ),
    )(x, w1, b1_col, w2, b2_s)

    # (1, B) -> (B, 1); element b of the flat output is row b of the result.
    return outT.reshape(B, 1)


def _reference(x, w1, b1, w2, b2):
    h = jnp.maximum(x @ w1.T + b1, 0.0)
    return jax.nn.sigmoid(h @ w2.T + b2)


if __name__ == "__main__":
    input_size = 16
    hidden_size = 32

    key = jax.random.PRNGKey(0)
    kx, kw1, kb1, kw2, kb2, kx2, kx3 = jax.random.split(key, 7)

    # PyTorch-like init: uniform(-1/sqrt(fan_in), 1/sqrt(fan_in)), weights (out, in).
    bound1 = 1.0 / jnp.sqrt(input_size)
    w1 = jax.random.uniform(kw1, (hidden_size, input_size),
                            minval=-bound1, maxval=bound1, dtype=jnp.float32)
    b1 = jax.random.uniform(kb1, (hidden_size,),
                            minval=-bound1, maxval=bound1, dtype=jnp.float32)

    bound2 = 1.0 / jnp.sqrt(hidden_size)
    w2 = jax.random.uniform(kw2, (1, hidden_size),
                            minval=-bound2, maxval=bound2, dtype=jnp.float32)
    b2 = jax.random.uniform(kb2, (1,),
                            minval=-bound2, maxval=bound2, dtype=jnp.float32)

    # Small batch (module spec scale): single grid step, single chunk, ragged.
    batch = 8
    x = jax.random.normal(kx, (batch, input_size), dtype=jnp.float32)
    out = jax.block_until_ready(neural_net_forward(x, w1, b1, w2, b2))
    ref = _reference(x, w1, b1, w2, b2)
    assert out.shape == (batch, 1)
    assert jnp.allclose(out, ref, atol=2e-3, rtol=2e-3)

    # Medium batch: grid of 2 ("parallel" axis), ragged last block, no padding.
    batch2 = 1000
    x2 = jax.random.normal(kx2, (batch2, input_size), dtype=jnp.float32)
    out2 = jax.block_until_ready(neural_net_forward(x2, w1, b1, w2, b2))
    ref2 = _reference(x2, w1, b1, w2, b2)
    assert out2.shape == (batch2, 1)
    assert jnp.allclose(out2, ref2, atol=2e-3, rtol=2e-3)

    # Larger batch: exercises the inner multi-chunk fori_loop (n_chunks > 1).
    batch3 = 3000
    x3 = jax.random.normal(kx3, (batch3, input_size), dtype=jnp.float32)
    out3 = jax.block_until_ready(neural_net_forward(x3, w1, b1, w2, b2))
    ref3 = _reference(x3, w1, b1, w2, b2)
    assert out3.shape == (batch3, 1)
    assert jnp.allclose(out3, ref3, atol=2e-3, rtol=2e-3)

    print("KERNEL_OK")
</pallas_src>

<mosaic_0001>
module attributes {stable_mosaic.version = 11 : i64} {
  func.func @mlp_kernel(%arg0: i32, %arg1: memref<128x16xf32, #tpu.memory_space<vmem>>, %arg2: memref<32x16xf32, #tpu.memory_space<vmem>>, %arg3: memref<32x1xf32, #tpu.memory_space<vmem>>, %arg4: memref<1x32xf32, #tpu.memory_space<vmem>>, %arg5: memref<1x1xf32, #tpu.memory_space<smem>>, %arg6: memref<1x128xf32, #tpu.memory_space<vmem>>) attributes {dimension_semantics = [#tpu.dimension_semantics<parallel>], iteration_bounds = array<i64: 1>, scalar_prefetch = 0 : i64, scratch_operands = 0 : i64, tpu.core_type = #tpu.core_type<tc>, window_params = [{transform_indices = @transform_0, window_bounds = array<i64: 128, 16>}, {pipeline_mode = #tpu.pipeline_mode<synchronous>, transform_indices = @transform_1, window_bounds = array<i64: 32, 16>}, {pipeline_mode = #tpu.pipeline_mode<synchronous>, transform_indices = @transform_2, window_bounds = array<i64: 32, 1>}, {pipeline_mode = #tpu.pipeline_mode<synchronous>, transform_indices = @transform_3, window_bounds = array<i64: 1, 32>}, {transform_indices = @transform_4, window_bounds = array<i64: 1, 1>}, {transform_indices = @transform_5, window_bounds = array<i64: 1, 128>}]} {
    %c0 = arith.constant 0 : index
    %c0_0 = arith.constant 0 : index
    %0 = vector.load %arg2[%c0, %c0_0] : memref<32x16xf32, #tpu.memory_space<vmem>>, vector<32x16xf32>
    %c0_1 = arith.constant 0 : index
    %c0_2 = arith.constant 0 : index
    %1 = vector.load %arg3[%c0_1, %c0_2] : memref<32x1xf32, #tpu.memory_space<vmem>>, vector<32x1xf32>
    %c0_3 = arith.constant 0 : index
    %c0_4 = arith.constant 0 : index
    %2 = vector.load %arg4[%c0_3, %c0_4] : memref<1x32xf32, #tpu.memory_space<vmem>>, vector<1x32xf32>
    %c0_5 = arith.constant 0 : index
    %c0_6 = arith.constant 0 : index
    %3 = memref.load %arg5[%c0_5, %c0_6] : memref<1x1xf32, #tpu.memory_space<smem>>
    %c0_i32 = arith.constant 0 : i32
    %c128_i32 = arith.constant 128 : i32
    %4 = arith.muli %c0_i32, %c128_i32 : i32
    %5 = tpu.assume_multiple %4, 128 : i32
    %6 = arith.index_cast %5 : i32 to index
    %c0_7 = arith.constant 0 : index
    %7 = vector.load %arg1[%6, %c0_7] : memref<128x16xf32, #tpu.memory_space<vmem>>, vector<128x16xf32>
    %8 = tpu.transpose %7, [1, 0] : vector<128x16xf32> -> vector<16x128xf32>
    %cst = arith.constant dense<0.000000e+00> : vector<32x128xf32>
    %9 = tpu.matmul %0, %8, %cst {dimension_numbers = #tpu.dot_dimension_numbers<[1], [0], [0], [1], [0, 0, 1, 1], [], []>} : vector<32x16xf32>, vector<16x128xf32>, vector<32x128xf32> -> vector<32x128xf32>
    %10 = vector.broadcast %1 : vector<32x1xf32> to vector<32x128xf32>
    %11 = arith.addf %9, %10 : vector<32x128xf32>
    %cst_8 = arith.constant 0.000000e+00 : f32
    %12 = vector.broadcast %cst_8 : f32 to vector<32x128xf32>
    %13 = arith.maximumf %11, %12 : vector<32x128xf32>
    %cst_9 = arith.constant dense<0.000000e+00> : vector<1x128xf32>
    %14 = tpu.matmul %2, %13, %cst_9 {dimension_numbers = #tpu.dot_dimension_numbers<[1], [0], [0], [1], [0, 0, 1, 1], [], []>} : vector<1x32xf32>, vector<32x128xf32>, vector<1x128xf32> -> vector<1x128xf32>
    %15 = vector.broadcast %3 : f32 to vector<1x128xf32>
    %16 = arith.addf %14, %15 : vector<1x128xf32>
    %cst_10 = arith.constant 0.000000e+00 : f32
    %17 = vector.broadcast %cst_10 : f32 to vector<1x128xf32>
    %18 = arith.subf %17, %16 : vector<1x128xf32>
    %19 = math.exp %18 : vector<1x128xf32>
    %cst_11 = arith.constant 1.000000e+00 : f32
    %20 = vector.broadcast %cst_11 : f32 to vector<1x128xf32>
    %21 = arith.addf %20, %19 : vector<1x128xf32>
    %22 = tpu.reciprocal %21 {approx = true} : vector<1x128xf32> -> vector<1x128xf32>
    %c0_12 = arith.constant 0 : index
    %23 = arith.index_cast %5 : i32 to index
    %24 = vector.load %arg6[%c0_12, %23] : memref<1x128xf32, #tpu.memory_space<vmem>>, vector<1x128xf32>
    tpu.vector_store %arg6[%c0_12, %23], %22 {strides = array<i32>} : memref<1x128xf32, #tpu.memory_space<vmem>>, vector<1x128xf32>,
    %c1_i32 = arith.constant 1 : i32
    return
  }
  func.func @transform_0(%arg0: i32) -> (i32, i32) {
    %c0_i32 = arith.constant 0 : i32
    %c0_i32_0 = arith.constant 0 : i32
    return %arg0, %c0_i32 : i32, i32
  }
  func.func @transform_1(%arg0: i32) -> (i32, i32) {
    %c0_i32 = arith.constant 0 : i32
    %c0_i32_0 = arith.constant 0 : i32
    %c0_i32_1 = arith.constant 0 : i32
    return %c0_i32, %c0_i32_0 : i32, i32
  }
  func.func @transform_2(%arg0: i32) -> (i32, i32) {
    %c0_i32 = arith.constant 0 : i32
    %c0_i32_0 = arith.constant 0 : i32
    %c0_i32_1 = arith.constant 0 : i32
    return %c0_i32, %c0_i32_0 : i32, i32
  }
  func.func @transform_3(%arg0: i32) -> (i32, i32) {
    %c0_i32 = arith.constant 0 : i32
    %c0_i32_0 = arith.constant 0 : i32
    %c0_i32_1 = arith.constant 0 : i32
    return %c0_i32, %c0_i32_0 : i32, i32
  }
  func.func @transform_4(%arg0: i32) -> (i32, i32) {
    %c0_i32 = arith.constant 0 : i32
    %c0_i32_0 = arith.constant 0 : i32
    %c0_i32_1 = arith.constant 0 : i32
    return %c0_i32, %c0_i32_0 : i32, i32
  }
  func.func @transform_5(%arg0: i32) -> (i32, i32) {
    %c0_i32 = arith.constant 0 : i32
    %c0_i32_0 = arith.constant 0 : i32
    return %c0_i32, %arg0 : i32, i32
  }
}

</mosaic_0001>

<llo_original>
// kernel: neural_net_forward.1
$region0: #{neural_net_forward.1}
  #allocation0 [shape = 'u32[]', space=smem, size = 0x4, offset = 0x4, fixed_abs, tag = 'smem constant byte address 0x4 - core index']
  #allocation1 [shape = 'u32[144,128]{1,0:T(1,128)}', space=vmem, size = 0x12000, scoped, tag = 'internal scratch']
  #allocation2 [shape = 'f32[1,1]{1,0:T(1,128)S(6)}', space=smem, size = 0x200, scoped, tag = 'scoped memory for neural_net_forward.1']
  %s0 = inlined_call_operand.vmem [shape: f32[8,16], index: 0, kind: input, shape index: {}]
  %s1 = inlined_call_operand.vmem [shape: f32[32,16], index: 1, kind: input, shape index: {}]
  %s2 = inlined_call_operand.vmem [shape: f32[32,1], index: 2, kind: input, shape index: {}]
  %s3 = inlined_call_operand.vmem [shape: f32[1,32], index: 3, kind: input, shape index: {}]
  %s4 = inlined_call_operand.<no memory space> [shape: f32[1,1], index: 4, kind: input, shape index: {}]
  %s5 = inlined_call_operand.hbm [shape: f32[1,8], index: 5, kind: output, shape index: {}]
  %s6 = sld [smem:[#allocation0]]
  $region30: #{neural_net_forward.1} parent=0
    _
  %s8 = ssub.s32 1, %s6
  %s9 = scalar_select 0, %s8, %s6
  %10 = sst [smem:[#allocation2]] %s4
  $region1: #{neural_net_forward.1} parent=0
    #allocation3 [shape = 'u8[512]{0}', space=vmem, size = 0x400, scoped, tag = 'output window, operand 0, single buffered']
    #allocation4 [shape = 's32[1]{0}', space=sflag, size = 0x4, scoped, tag = 'scoped memory for neural_net_forward.1']
    %11 = vsyncpa [#allocation4], 0
    // Predicated region
    $region2: #{neural_net_forward.1} parent=1 // pred_check
      _
    $region3: #{neural_net_forward.1} parent=1 // pred_check_branch
      %13 = sbr.rel (0) target = $region5
    $region4: #{neural_net_forward.1} parent=1 // pred_region
      _
    $region5: #{neural_net_forward.1} parent=1 // pred_fallthru
      _
    // Predicated region
    $region6: #{neural_net_forward.1} parent=1 // pred_check
      _
    $region7: #{neural_net_forward.1} parent=1 // pred_check_branch
      %15 = sbr.rel (0) target = $region9
    $region8: #{neural_net_forward.1} parent=1 // pred_region
      _
    $region9: #{neural_net_forward.1} parent=1 // pred_fallthru
      _
    // Predicated region
    $region10: #{neural_net_forward.1} parent=1 // pred_check
      _
    $region11: #{neural_net_forward.1} parent=1 // pred_check_branch
      %17 = sbr.rel (0) target = $region13
    $region12: #{neural_net_forward.1} parent=1 // pred_region
      _
    $region13: #{neural_net_forward.1} parent=1 // pred_fallthru
      _
    // Predicated region
    $region14: #{neural_net_forward.1} parent=1 // pred_check
      _
    $region15: #{neural_net_forward.1} parent=1 // pred_check_branch
      %19 = sbr.rel (0) target = $region17
    $region16: #{neural_net_forward.1} parent=1 // pred_region
      _
    $region17: #{neural_net_forward.1} parent=1 // pred_fallthru
      _
    // Predicated region
    $region18: #{neural_net_forward.1} parent=1 // pred_check
      _
    $region19: #{neural_net_forward.1} parent=1 // pred_check_branch
      %21 = sbr.rel (0) target = $region21
    $region20: #{neural_net_forward.1} parent=1 // pred_region
      _
    $region21: #{neural_net_forward.1} parent=1 // pred_fallthru
      _
    %v22 = vld [vmem:[%s1] sm:$0xff]
    %v23 = vld [vmem:[%s1 + $0x8] sm:$0xff]
    %v24 = vld [vmem:[%s1 + $0x10] sm:$0xff]
    %v25 = vld [vmem:[%s1 + $0x18] sm:$0xff]
    %v26 = vld [vmem:[%s2] sm:$0xff]
    %v27 = vld [vmem:[%s2 + $0x8] sm:$0xff]
    %v28 = vld [vmem:[%s2 + $0x10] sm:$0xff]
    %v29 = vld [vmem:[%s2 + $0x18] sm:$0xff]
    %v30 = vld [vmem:[%s3] sm:$0x1]
    %s31 = sld [smem:[#allocation2]]
    %v32 = vld [vmem:[%s0] sm:$0xff]
    %v33 = vld [vmem:[%s0 + $0x8] sm:$0xff]
    %v34 = vld [vmem:[%s0 + $0x10] sm:$0xff]
    %v35 = vld [vmem:[%s0 + $0x18] sm:$0xff]
    %v36 = vld [vmem:[%s0 + $0x20] sm:$0xff]
    %v37 = vld [vmem:[%s0 + $0x28] sm:$0xff]
    %v38 = vld [vmem:[%s0 + $0x30] sm:$0xff]
    %v39 = vld [vmem:[%s0 + $0x38] sm:$0xff]
    %v40 = vld [vmem:[%s0 + $0x40] sm:$0xff]
    %v41 = vld [vmem:[%s0 + $0x48] sm:$0xff]
    %v42 = vld [vmem:[%s0 + $0x50] sm:$0xff]
    %v43 = vld [vmem:[%s0 + $0x58] sm:$0xff]
    %v44 = vld [vmem:[%s0 + $0x60] sm:$0xff]
    %v45 = vld [vmem:[%s0 + $0x68] sm:$0xff]
    %v46 = vld [vmem:[%s0 + $0x70] sm:$0xff]
    %v47 = vld [vmem:[%s0 + $0x78] sm:$0xff]
    %49 = vset.pattern.permute.xlu0 0
    %50 = vperm.xlu0 %49, %v26
    %v51 = vpop.permute.xlu0 %50
    %54 = vset.pattern.permute.xlu0 0
    %55 = vperm.xlu0 %54, %v27
    %v56 = vpop.permute.xlu0 %55
    %59 = vset.pattern.permute.xlu0 0
    %60 = vperm.xlu0 %59, %v28
    %v61 = vpop.permute.xlu0 %60
    %64 = vset.pattern.permute.xlu0 0
    %65 = vperm.xlu0 %64, %v29
    %v66 = vpop.permute.xlu0 %65
    %vm68 = vcmask 130048
    %v70 = vsel %vm68, %v22, 0
    %v73 = vsel %vm68, %v23, 0
    %v76 = vsel %vm68, %v24, 0
    %v79 = vsel %vm68, %v25, 0
    %v82 = vsel %vm68, %v32, 0
    %v85 = vsel %vm68, %v33, 0
    %v88 = vsel %vm68, %v34, 0
    %v91 = vsel %vm68, %v35, 0
    %v94 = vsel %vm68, %v36, 0
    %v97 = vsel %vm68, %v37, 0
    %v100 = vsel %vm68, %v38, 0
    %v103 = vsel %vm68, %v39, 0
    %v106 = vsel %vm68, %v40, 0
    %v109 = vsel %vm68, %v41, 0
    %v112 = vsel %vm68, %v42, 0
    %v115 = vsel %vm68, %v43, 0
    %v118 = vsel %vm68, %v44, 0
    %v121 = vsel %vm68, %v45, 0
    %v124 = vsel %vm68, %v46, 0
    %v127 = vsel %vm68, %v47, 0
    %129 = vmatprep.subr.mxu0 0.0
    %130 = vmatpush1.xpose.msra.mxu0 %v82
    %131 = vmatprep.subr.mxu0 0.0
    %132 = vmatpush1.xpose.msra.mxu0 %v85
    %133 = vmatprep.subr.mxu0 0.0
    %134 = vmatpush1.xpose.msra.mxu0 %v88
    %135 = vmatprep.subr.mxu0 0.0
    %136 = vmatpush1.xpose.msra.mxu0 %v91
    %137 = vmatprep.subr.mxu0 0.0
    %138 = vmatpush1.xpose.msra.mxu0 %v94
    %139 = vmatprep.subr.mxu0 0.0
    %140 = vmatpush1.xpose.msra.mxu0 %v97
    %141 = vmatprep.subr.mxu0 0.0
    %142 = vmatpush1.xpose.msra.mxu0 %v100
    %143 = vmatprep.subr.mxu0 0.0
    %144 = vmatpush1.xpose.msra.mxu0 %v103
    %145 = vmatprep.subr.mxu0 0.0
    %146 = vmatpush1.xpose.msra.mxu0 %v106
    %147 = vmatprep.subr.mxu0 0.0
    %148 = vmatpush1.xpose.msra.mxu0 %v109
    %149 = vmatprep.subr.mxu0 0.0
    %150 = vmatpush1.xpose.msra.mxu0 %v112
    %151 = vmatprep.subr.mxu0 0.0
    %152 = vmatpush1.xpose.msra.mxu0 %v115
    %153 = vmatprep.subr.mxu0 0.0
    %154 = vmatpush1.xpose.msra.mxu0 %v118
    %155 = vmatprep.subr.mxu0 0.0
    %156 = vmatpush1.xpose.msra.mxu0 %v121
    %157 = vmatprep.subr.mxu0 0.0
    %158 = vmatpush1.xpose.msra.mxu0 %v124
    %159 = vmatprep.subr.mxu0 0.0
    %160 = vmatpush1.xpose.msra.mxu0 %v127
    %161 = vmatprep.subr.mxu0 0.0
    %162 = vmatpush1.xpose.msra.mxu0 0.0
    %163 = vmatprep.subr.mxu0 0.0
    %164 = vmatpush1.xpose.msra.mxu0 0.0
    %165 = vmatprep.subr.mxu0 0.0
    %166 = vmatpush1.xpose.msra.mxu0 0.0
    %167 = vmatprep.subr.mxu0 0.0
    %168 = vmatpush1.xpose.msra.mxu0 0.0
    %169 = vmatprep.subr.mxu0 0.0
    %170 = vmatpush1.xpose.msra.mxu0 0.0
    %171 = vmatprep.subr.mxu0 0.0
    %172 = vmatpush1.xpose.msra.mxu0 0.0
    %173 = vmatprep.subr.mxu0 0.0
    %174 = vmatpush1.xpose.msra.mxu0 0.0
    %175 = vmatprep.subr.mxu0 0.0
    %176 = vmatpush1.xpose.msra.mxu0 0.0
    %177 = vmatprep.subr.mxu0 0.0
    %178 = vmatpush1.xpose.msra.mxu0 0.0
    %179 = vmatprep.subr.mxu0 0.0
    %180 = vmatpush1.xpose.msra.mxu0 0.0
    %181 = vmatprep.subr.mxu0 0.0
    %182 = vmatpush1.xpose.msra.mxu0 0.0
    %183 = vmatprep.subr.mxu0 0.0
    %184 = vmatpush1.xpose.msra.mxu0 0.0
    %185 = vmatprep.subr.mxu0 0.0
    %186 = vmatpush1.xpose.msra.mxu0 0.0
    %187 = vmatprep.subr.mxu0 0.0
    %188 = vmatpush1.xpose.msra.mxu0 0.0
    %189 = vmatprep.subr.mxu0 0.0
    %190 = vmatpush1.xpose.msra.mxu0 0.0
    %191 = vmatprep.subr.mxu0 0.0
    %192 = vmatpush1.xpose.msra.mxu0 0.0
    %193 = vmatprep.mubr.f32.mxu0 0.0
    %194 = vmatmul.mubr.f32.gmra.mrb[0].mxu0 %v70
    %v195 = vpop.f32.mrb[0].mxu0
    %v196 = vadd.f32 %v51, %v195
    %v197 = vpop.f32.mrb[0].mxu0
    %198 = vmatprep.mubr.f32.mxu0 0.0
    %199 = vmatmul.mubr.f32.gmra.mrb[0].mxu0 %v73
    %v200 = vpop.f32.mrb[0].mxu0
    %v201 = vadd.f32 %v56, %v200
    %v202 = vpop.f32.mrb[0].mxu0
    %203 = vmatprep.mubr.f32.mxu0 0.0
    %204 = vmatmul.mubr.f32.gmra.mrb[0].mxu0 %v76
    %v205 = vpop.f32.mrb[0].mxu0
    %v206 = vadd.f32 %v61, %v205
    %v207 = vpop.f32.mrb[0].mxu0
    %208 = vmatprep.mubr.f32.mxu0 0.0
    %209 = vmatmul.mubr.f32.gmra.mrb[0].mxu0 %v79
    %v210 = vpop.f32.mrb[0].mxu0
    %v211 = vadd.f32 %v66, %v210
    %v212 = vpop.f32.mrb[0].mxu0
    %213 = vdwg.mxu0
    %v214 = vmax.f32 %v196, 0.0
    %v215 = vmax.f32 %v201, 0.0
    %v216 = vmax.f32 %v206, 0.0
    %v217 = vmax.f32 %v211, 0.0
    %v218 = vstv %s31
    %vm219 = vcmask 261120
    %v221 = vsel %vm219, %v30, 0
    %223 = vmatprep.subr.mxu0 0.0
    %224 = vmatpush1.msra.mxu0 %v214
    %225 = vmatprep.subr.mxu0 0.0
    %226 = vmatpush1.msra.mxu0 %v215
    %227 = vmatprep.subr.mxu0 0.0
    %228 = vmatpush1.msra.mxu0 %v216
    %229 = vmatprep.subr.mxu0 0.0
    %230 = vmatpush1.msra.mxu0 %v217
    %231 = vmatprep.subr.mxu0 0.0
    %232 = vmatpush1.msra.mxu0 0.0
    %233 = vmatprep.subr.mxu0 0.0
    %234 = vmatpush1.msra.mxu0 0.0
    %235 = vmatprep.subr.mxu0 0.0
    %236 = vmatpush1.msra.mxu0 0.0
    %237 = vmatprep.subr.mxu0 0.0
    %238 = vmatpush1.msra.mxu0 0.0
    %239 = vmatprep.subr.mxu0 0.0
    %240 = vmatpush1.msra.mxu0 0.0
    %241 = vmatprep.subr.mxu0 0.0
    %242 = vmatpush1.msra.mxu0 0.0
    %243 = vmatprep.subr.mxu0 0.0
    %244 = vmatpush1.msra.mxu0 0.0
    %245 = vmatprep.subr.mxu0 0.0
    %246 = vmatpush1.msra.mxu0 0.0
    %247 = vmatprep.subr.mxu0 0.0
    %248 = vmatpush1.msra.mxu0 0.0
    %249 = vmatprep.subr.mxu0 0.0
    %250 = vmatpush1.msra.mxu0 0.0
    %251 = vmatprep.subr.mxu0 0.0
    %252 = vmatpush1.msra.mxu0 0.0
    %253 = vmatprep.subr.mxu0 0.0
    %254 = vmatpush1.msra.mxu0 0.0
    %255 = vmatprep.subr.mxu0 0.0
    %256 = vmatpush1.msra.mxu0 0.0
    %257 = vmatprep.subr.mxu0 0.0
    %258 = vmatpush1.msra.mxu0 0.0
    %259 = vmatprep.subr.mxu0 0.0
    %260 = vmatpush1.msra.mxu0 0.0
    %261 = vmatprep.subr.mxu0 0.0
    %262 = vmatpush1.msra.mxu0 0.0
    %263 = vmatprep.subr.mxu0 0.0
    %264 = vmatpush1.msra.mxu0 0.0
    %265 = vmatprep.subr.mxu0 0.0
    %266 = vmatpush1.msra.mxu0 0.0
    %267 = vmatprep.subr.mxu0 0.0
    %268 = vmatpush1.msra.mxu0 0.0
    %269 = vmatprep.subr.mxu0 0.0
    %270 = vmatpush1.msra.mxu0 0.0
    %271 = vmatprep.subr.mxu0 0.0
    %272 = vmatpush1.msra.mxu0 0.0
    %273 = vmatprep.subr.mxu0 0.0
    %274 = vmatpush1.msra.mxu0 0.0
    %275 = vmatprep.subr.mxu0 0.0
    %276 = vmatpush1.msra.mxu0 0.0
    %277 = vmatprep.subr.mxu0 0.0
    %278 = vmatpush1.msra.mxu0 0.0
    %279 = vmatprep.subr.mxu0 0.0
    %280 = vmatpush1.msra.mxu0 0.0
    %281 = vmatprep.subr.mxu0 0.0
    %282 = vmatpush1.msra.mxu0 0.0
    %283 = vmatprep.subr.mxu0 0.0
    %284 = vmatpush1.msra.mxu0 0.0
    %285 = vmatprep.subr.mxu0 0.0
    %286 = vmatpush1.msra.mxu0 0.0
    %287 = vmatprep.mubr.f32.mxu0 0.0
    %288 = vmatmul.mubr.f32.gmra.mrb[0].mxu0 %v221
    %v289 = vpop.f32.mrb[0].mxu0
    %v290 = vadd.f32 %v218, %v289
    %v291 = vpop.f32.mrb[0].mxu0
    %292 = vdwg.mxu0
    %v293 = vsub.f32 0.0, %v290
    %v294 = vmul.f32 %v293, 1.442695
    %v295 = vpow.pop %v294
    %v296 = vadd.f32 %v295, 1.0
    %v297 = vrcp.pop %v296
    %298 = vst [vmem:[#allocation3] sm:$0x1] %v297
    // Predicated region
    $region22: #{neural_net_forward.1} parent=1 // pred_check
      _
    $region23: #{neural_net_forward.1} parent=1 // pred_check_branch
      %300 = sbr.rel (0) target = $region25
    $region24: #{neural_net_forward.1} parent=1 // pred_region
      %s302 = ssub.s32 16, 16
      %303 = vsyncadd [#allocation4], %s302
      %s305 = sshll.u32 [#allocation3], 4
      %s306 = int_to_ptr.vmem [resolvable:$true] %s305
      %308 = dma.vmem_to_hbm [thread:$0]  %s306, 16, %s5, [#allocation4]
    $region25: #{neural_net_forward.1} parent=1 // pred_fallthru
      _
    // Predicated region
    $region26: #{neural_net_forward.1} parent=1 // pred_check
      _
    $region27: #{neural_net_forward.1} parent=1 // pred_check_branch
      %310 = sbr.rel (0) target = $region29
    $region28: #{neural_net_forward.1} parent=1 // pred_region
      %311 = dma.done [#allocation4], 16
    $region29: #{neural_net_forward.1} parent=1 // pred_fallthru
      _
    %312 = vsyncpa [#allocation4], 1

</llo_original>
